<compile_context>
chip_gen: v6e
topology: v6e:2x2x1
jax: 0.10.0
libtpu: 0.0.40
codegen_flags: <defaults>
</compile_context>

<pallas_src>
import functools

import jax
import jax.numpy as jnp
from jax.experimental import pallas as pl
from jax.experimental.pallas import tpu as pltpu

LANE = 128


def _round_up(x, m):
    return (x + m - 1) // m * m


def _vmem_capacity_bytes():
    try:
        return int(pltpu.get_tpu_info().vmem_capacity_bytes)
    except Exception:  # conservative fallback (v7x-sized)
        return 64 * 1024 * 1024


def _num_tensorcores():
    try:
        info = pltpu.get_tpu_info()
        for attr in ("num_cores", "tensorcore_count", "num_tensorcores", "core_count"):
            v = getattr(info, attr, None)
            if isinstance(v, int) and 0 < v <= 8:
                return v
    except Exception:
        pass
    try:
        kind = jax.devices()[0].device_kind.lower()
        if "v7" in kind or "7x" in kind:
            return 2
    except Exception:
        pass
    return 1


def perm_equi1_max_kernel(x_ref, wt_ref, b_ref, o_ref, *, tb, n_pad, matmul_dtype):
    # x_ref:  (tb, n_pad, Din)   tb sets per grid step
    # wt_ref: (Din, TN)          Linear weight slice, pre-transposed, matmul dtype
    # b_ref:  (1, TN)            Linear bias slice (f32)
    # o_ref:  (tb, n_pad, TN)
    din = x_ref.shape[-1]
    tn = o_ref.shape[-1]
    x = x_ref[...]                                    # (tb, n_pad, din)
    xm = jnp.max(x, axis=1, keepdims=True)            # exact max over the set dim
    xc = (x - xm).reshape(tb * n_pad, din)            # layout-preserving (n_pad aligned)
    if xc.dtype != matmul_dtype:
        xc = xc.astype(matmul_dtype)
    # One large matmul on the MXU; f32 accumulation regardless of operand dtype.
    y = jnp.dot(xc, wt_ref[...], preferred_element_type=jnp.float32)  # (tb*n_pad, tn)
    y = y + b_ref[...]                                 # sublane-broadcast bias (f32)
    o_ref[...] = y.reshape(tb, n_pad, tn).astype(o_ref.dtype)


def perm_equi1_max(x, weight, bias, *, use_bf16_matmul=None):
    """PermEqui1_max forward.

    x:      (B, N, Din)
    weight: (Dout, Din)   (PyTorch nn.Linear layout)
    bias:   (Dout,)
    returns (B, N, Dout)
    """
    B, N, Din = x.shape
    Dout = weight.shape[0]
    x_dtype = x.dtype
    x_it = jnp.dtype(x_dtype).itemsize
    o_it = x_it

    vmem_cap = _vmem_capacity_bytes()
    n_cores = _num_tensorcores()

    # ---- matmul operand dtype: bf16 only where the layer is compute-bound ----
    if use_bf16_matmul is None:
        use_bf16_matmul = (x_dtype == jnp.float32) and Din >= 256 and Dout >= 256
    matmul_dtype = jnp.bfloat16 if use_bf16_matmul else x_dtype
    w_it = jnp.dtype(matmul_dtype).itemsize

    # ---- pad the set dim so the in-kernel flatten is layout-preserving -------
    pack = max(1, 4 // x_it) * 8          # sublane packing: 8 (f32), 16 (bf16)
    N_pad = _round_up(N, pack)
    if N_pad != N:
        # Replicate the last row: keeps the per-set max unchanged; the extra
        # output rows are sliced off below.
        x = jnp.pad(x, ((0, 0), (0, N_pad - N), (0, 0)), mode="edge")

    # ---- output-feature layout: pad / tile only when it pays off -------------
    w_tile_budget = max(LANE * Din * w_it, vmem_cap // 10)  # per-buffer weight budget
    if Dout % LANE == 0:
        Dout_k = Dout
    elif Din * Dout * w_it > w_tile_budget:
        Dout_k = _round_up(Dout, LANE)    # pad so the weight can be Dout-tiled
    else:
        Dout_k = Dout                     # small layer: masked stores, no pad/slice
    if Dout_k % LANE == 0:
        tn = min(Dout_k, max(LANE, (w_tile_budget // (Din * w_it)) // LANE * LANE))
        while Dout_k % tn != 0:
            tn -= LANE
    else:
        tn = Dout_k
    n_j = Dout_k // tn

    # Weight pre-transposed and pre-cast (no per-step cast in the kernel);
    # bias kept f32 (added after f32 accumulation).
    wt = jnp.zeros((Din, Dout_k), matmul_dtype).at[:, :Dout].set(
        weight.T.astype(matmul_dtype))
    b2 = jnp.zeros((1, Dout_k), jnp.float32).at[:, :Dout].set(bias.astype(jnp.float32))

    # ---- sets per grid step: fill the MXU M-dim and amortize step overhead ---
    per_set_traffic = N_pad * (Din * x_it + Dout_k * o_it)   # HBM bytes / set / step
    traffic_target = 12 * 1024 * 1024                        # ~8-16 MB per grid step
    tb_traffic = -(-traffic_target // max(per_set_traffic, 1))
    tb_rows = -(-512 // N_pad)                               # >= 512 MXU rows / step

    # Honest VMEM accounting: double-buffered x/out blocks, resident weight
    # buffers, and in-kernel temporaries (centered copy, optional bf16 cast,
    # f32 matmul result).
    w_bufs = 1 if n_j == 1 else 2
    weight_resident = w_bufs * (Din * tn * w_it + tn * 4)
    per_set_vmem = N_pad * (
        2 * Din * x_it                                      # x block (double buffered)
        + 2 * tn * o_it                                     # out block (double buffered)
        + Din * (x_it + (2 if use_bf16_matmul else 0))      # centered copy (+ cast)
        + 2 * tn * 4)                                       # f32 result + bias-add temp
    vmem_budget = int(0.80 * vmem_cap) - weight_resident - (4 << 20)
    tb_vmem = max(1, vmem_budget // max(per_set_vmem, 1))

    tb = int(max(1, min(B, max(tb_rows, tb_traffic), tb_vmem)))
    while B % tb != 0:
        tb -= 1
    # Keep >= 2 grid steps only on multi-TensorCore chips (v7x) so both cores
    # get work under dimension_semantics=("parallel", ...).
    if n_cores >= 2 and (B // tb) * n_j < n_cores and B >= 2 and (B // 2) * N_pad >= 256:
        tb = B // 2
        while B % tb != 0:
            tb -= 1

    grid = (B // tb, n_j)
    rows = tb * N_pad

    # Scoped VMEM limit: what the chosen blocks need (+ headroom), capped at
    # ~85% of physical so the compiler keeps scratch/semaphore headroom.
    x_blk = rows * Din * x_it
    o_blk = rows * tn * o_it
    temporaries = rows * (Din * (x_it + (2 if use_bf16_matmul else 0)) + 2 * tn * 4)
    need = 2 * x_blk + 2 * o_blk + weight_resident + temporaries
    vmem_limit = int(min(int(0.85 * vmem_cap), max(need + (8 << 20), 32 << 20)))

    kernel = functools.partial(perm_equi1_max_kernel, tb=tb, n_pad=N_pad,
                               matmul_dtype=matmul_dtype)

    def build(single_buffer_weights):
        wb_kwargs = {}
        if single_buffer_weights and n_j == 1 and hasattr(pl, "Buffered"):
            try:
                wb_kwargs = dict(pipeline_mode=pl.Buffered(1))  # grid-invariant blocks
            except Exception:
                wb_kwargs = {}
        try:
            w_spec = pl.BlockSpec((Din, tn), lambda i, j: (0, j), **wb_kwargs)
            b_spec = pl.BlockSpec((1, tn), lambda i, j: (0, j), **wb_kwargs)
        except TypeError:  # pipeline_mode kwarg not supported by this JAX build
            w_spec = pl.BlockSpec((Din, tn), lambda i, j: (0, j))
            b_spec = pl.BlockSpec((1, tn), lambda i, j: (0, j))
        return pl.pallas_call(
            kernel,
            out_shape=jax.ShapeDtypeStruct((B, N_pad, Dout_k), x_dtype),
            grid_spec=pltpu.PrefetchScalarGridSpec(
                num_scalar_prefetch=0,
                grid=grid,
                in_specs=[
                    pl.BlockSpec((tb, N_pad, Din), lambda i, j: (i, 0, 0)),
                    w_spec,
                    b_spec,
                ],
                out_specs=pl.BlockSpec((tb, N_pad, tn), lambda i, j: (i, 0, j)),
            ),
            compiler_params=pltpu.CompilerParams(
                dimension_semantics=("parallel", "parallel"),
                vmem_limit_bytes=vmem_limit),
        )

    try:
        out = build(True)(x, wt, b2)
    except Exception:
        # Fall back to default double-buffered weight/bias blocks.
        out = build(False)(x, wt, b2)

    if N_pad != N or Dout_k != Dout:
        out = out[:, :N, :Dout]
    return out


def perm_equi1_max_ref(x, weight, bias):
    xm = jnp.max(x, axis=1, keepdims=True)
    return (x - xm) @ weight.T + bias


if __name__ == "__main__":
    B, N, Din, Dout = 2, 8, 32, 32

    key = jax.random.PRNGKey(0)
    kx, kw, kb = jax.random.split(key, 3)

    x = jax.random.normal(kx, (B, N, Din), dtype=jnp.float32)
    # Deterministic Linear(in_dim=Din, out_dim=Dout) parameters
    # (PyTorch-style uniform(-1/sqrt(Din), 1/sqrt(Din)) init).
    bound = 1.0 / jnp.sqrt(jnp.float32(Din))
    weight = jax.random.uniform(kw, (Dout, Din), jnp.float32, -bound, bound)
    bias = jax.random.uniform(kb, (Dout,), jnp.float32, -bound, bound)

    out = perm_equi1_max(x, weight, bias)  # small shape -> exact f32 MXU operands
    out = jax.block_until_ready(out)

    ref = perm_equi1_max_ref(x, weight, bias)
    assert out.shape == (B, N, Dout)
    assert jnp.allclose(out, ref, atol=1e-5, rtol=1e-5), "mismatch vs reference"

    print("KERNEL_OK")
</pallas_src>

<mosaic_0001>
module attributes {stable_mosaic.version = 11 : i64} {
  func.func @perm_equi1_max_kernel(%arg0: i32, %arg1: i32, %arg2: memref<2x8x32xf32, #tpu.memory_space<vmem>>, %arg3: memref<32x32xf32, #tpu.memory_space<vmem>>, %arg4: memref<1x32xf32, #tpu.memory_space<vmem>>, %arg5: memref<2x8x32xf32, #tpu.memory_space<vmem>>) attributes {dimension_semantics = [#tpu.dimension_semantics<parallel>, #tpu.dimension_semantics<parallel>], iteration_bounds = array<i64: 1, 1>, scalar_prefetch = 0 : i64, scratch_operands = 0 : i64, tpu.core_type = #tpu.core_type<tc>, window_params = [{transform_indices = @transform_0, window_bounds = array<i64: 2, 8, 32>}, {pipeline_mode = #tpu.pipeline_mode<synchronous>, transform_indices = @transform_1, window_bounds = array<i64: 32, 32>}, {pipeline_mode = #tpu.pipeline_mode<synchronous>, transform_indices = @transform_2, window_bounds = array<i64: 1, 32>}, {transform_indices = @transform_3, window_bounds = array<i64: 2, 8, 32>}]} {
    %c0 = arith.constant 0 : index
    %c0_0 = arith.constant 0 : index
    %c0_1 = arith.constant 0 : index
    %0 = vector.load %arg2[%c0, %c0_0, %c0_1] : memref<2x8x32xf32, #tpu.memory_space<vmem>>, vector<2x8x32xf32>
    %cst = arith.constant dense<0xFF800000> : vector<2x32xf32>
    %1 = vector.multi_reduction <maximumf>, %0, %cst [1] : vector<2x8x32xf32> to vector<2x32xf32>
    %2 = vector.shape_cast %1 : vector<2x32xf32> to vector<2x1x32xf32>
    %3 = vector.broadcast %2 : vector<2x1x32xf32> to vector<2x8x32xf32>
    %4 = arith.subf %0, %3 : vector<2x8x32xf32>
    %5 = vector.shape_cast %4 : vector<2x8x32xf32> to vector<16x32xf32>
    %c0_2 = arith.constant 0 : index
    %c0_3 = arith.constant 0 : index
    %6 = vector.load %arg3[%c0_2, %c0_3] : memref<32x32xf32, #tpu.memory_space<vmem>>, vector<32x32xf32>
    %cst_4 = arith.constant dense<0.000000e+00> : vector<16x32xf32>
    %7 = tpu.matmul %5, %6, %cst_4 {dimension_numbers = #tpu.dot_dimension_numbers<[1], [0], [0], [1], [0, 0, 1, 1], [], []>} : vector<16x32xf32>, vector<32x32xf32>, vector<16x32xf32> -> vector<16x32xf32>
    %c0_5 = arith.constant 0 : index
    %c0_6 = arith.constant 0 : index
    %8 = vector.load %arg4[%c0_5, %c0_6] : memref<1x32xf32, #tpu.memory_space<vmem>>, vector<1x32xf32>
    %9 = vector.broadcast %8 : vector<1x32xf32> to vector<16x32xf32>
    %10 = arith.addf %7, %9 : vector<16x32xf32>
    %11 = vector.shape_cast %10 : vector<16x32xf32> to vector<2x8x32xf32>
    %c0_7 = arith.constant 0 : index
    %c0_8 = arith.constant 0 : index
    %c0_9 = arith.constant 0 : index
    %12 = vector.load %arg5[%c0_7, %c0_8, %c0_9] : memref<2x8x32xf32, #tpu.memory_space<vmem>>, vector<2x8x32xf32>
    tpu.vector_store %arg5[%c0_7, %c0_8, %c0_9], %11 {strides = array<i32>} : memref<2x8x32xf32, #tpu.memory_space<vmem>>, vector<2x8x32xf32>,
    return
  }
  func.func @transform_0(%arg0: i32, %arg1: i32) -> (i32, i32, i32) {
    %c0_i32 = arith.constant 0 : i32
    %c0_i32_0 = arith.constant 0 : i32
    %c0_i32_1 = arith.constant 0 : i32
    return %arg0, %c0_i32, %c0_i32_0 : i32, i32, i32
  }
  func.func @transform_1(%arg0: i32, %arg1: i32) -> (i32, i32) {
    %c0_i32 = arith.constant 0 : i32
    %c0_i32_0 = arith.constant 0 : i32
    return %c0_i32, %arg1 : i32, i32
  }
  func.func @transform_2(%arg0: i32, %arg1: i32) -> (i32, i32) {
    %c0_i32 = arith.constant 0 : i32
    %c0_i32_0 = arith.constant 0 : i32
    return %c0_i32, %arg1 : i32, i32
  }
  func.func @transform_3(%arg0: i32, %arg1: i32) -> (i32, i32, i32) {
    %c0_i32 = arith.constant 0 : i32
    %c0_i32_0 = arith.constant 0 : i32
    return %arg0, %c0_i32, %arg1 : i32, i32, i32
  }
}

module attributes {stable_mosaic.version = 11 : i64} {
  func.func @perm_equi1_max_kernel(%arg0: i32, %arg1: i32, %arg2: memref<2x8x32xf32, #tpu.memory_space<vmem>>, %arg3: memref<32x32xf32, #tpu.memory_space<vmem>>, %arg4: memref<1x32xf32, #tpu.memory_space<vmem>>, %arg5: memref<2x8x32xf32, #tpu.memory_space<vmem>>) attributes {dimension_semantics = [#tpu.dimension_semantics<parallel>, #tpu.dimension_semantics<parallel>], iteration_bounds = array<i64: 1, 1>, scalar_prefetch = 0 : i64, scratch_operands = 0 : i64, tpu.core_type = #tpu.core_type<tc>, window_params = [{transform_indices = @transform_0, window_bounds = array<i64: 2, 8, 32>}, {transform_indices = @transform_1, window_bounds = array<i64: 32, 32>}, {transform_indices = @transform_2, window_bounds = array<i64: 1, 32>}, {transform_indices = @transform_3, window_bounds = array<i64: 2, 8, 32>}]} {
    %c0 = arith.constant 0 : index
    %c0_0 = arith.constant 0 : index
    %c0_1 = arith.constant 0 : index
    %0 = vector.load %arg2[%c0, %c0_0, %c0_1] : memref<2x8x32xf32, #tpu.memory_space<vmem>>, vector<2x8x32xf32>
    %cst = arith.constant dense<0xFF800000> : vector<2x32xf32>
    %1 = vector.multi_reduction <maximumf>, %0, %cst [1] : vector<2x8x32xf32> to vector<2x32xf32>
    %2 = vector.shape_cast %1 : vector<2x32xf32> to vector<2x1x32xf32>
    %3 = vector.broadcast %2 : vector<2x1x32xf32> to vector<2x8x32xf32>
    %4 = arith.subf %0, %3 : vector<2x8x32xf32>
    %5 = vector.shape_cast %4 : vector<2x8x32xf32> to vector<16x32xf32>
    %c0_2 = arith.constant 0 : index
    %c0_3 = arith.constant 0 : index
    %6 = vector.load %arg3[%c0_2, %c0_3] : memref<32x32xf32, #tpu.memory_space<vmem>>, vector<32x32xf32>
    %cst_4 = arith.constant dense<0.000000e+00> : vector<16x32xf32>
    %7 = tpu.matmul %5, %6, %cst_4 {dimension_numbers = #tpu.dot_dimension_numbers<[1], [0], [0], [1], [0, 0, 1, 1], [], []>} : vector<16x32xf32>, vector<32x32xf32>, vector<16x32xf32> -> vector<16x32xf32>
    %c0_5 = arith.constant 0 : index
    %c0_6 = arith.constant 0 : index
    %8 = vector.load %arg4[%c0_5, %c0_6] : memref<1x32xf32, #tpu.memory_space<vmem>>, vector<1x32xf32>
    %9 = vector.broadcast %8 : vector<1x32xf32> to vector<16x32xf32>
    %10 = arith.addf %7, %9 : vector<16x32xf32>
    %11 = vector.shape_cast %10 : vector<16x32xf32> to vector<2x8x32xf32>
    %c0_7 = arith.constant 0 : index
    %c0_8 = arith.constant 0 : index
    %c0_9 = arith.constant 0 : index
    %12 = vector.load %arg5[%c0_7, %c0_8, %c0_9] : memref<2x8x32xf32, #tpu.memory_space<vmem>>, vector<2x8x32xf32>
    tpu.vector_store %arg5[%c0_7, %c0_8, %c0_9], %11 {strides = array<i32>} : memref<2x8x32xf32, #tpu.memory_space<vmem>>, vector<2x8x32xf32>,
    return
  }
  func.func @transform_0(%arg0: i32, %arg1: i32) -> (i32, i32, i32) {
    %c0_i32 = arith.constant 0 : i32
    %c0_i32_0 = arith.constant 0 : i32
    %c0_i32_1 = arith.constant 0 : i32
    return %arg0, %c0_i32, %c0_i32_0 : i32, i32, i32
  }
  func.func @transform_1(%arg0: i32, %arg1: i32) -> (i32, i32) {
    %c0_i32 = arith.constant 0 : i32
    %c0_i32_0 = arith.constant 0 : i32
    return %c0_i32, %arg1 : i32, i32
  }
  func.func @transform_2(%arg0: i32, %arg1: i32) -> (i32, i32) {
    %c0_i32 = arith.constant 0 : i32
    %c0_i32_0 = arith.constant 0 : i32
    return %c0_i32, %arg1 : i32, i32
  }
  func.func @transform_3(%arg0: i32, %arg1: i32) -> (i32, i32, i32) {
    %c0_i32 = arith.constant 0 : i32
    %c0_i32_0 = arith.constant 0 : i32
    return %arg0, %c0_i32, %arg1 : i32, i32, i32
  }
}

</mosaic_0001>

<llo_original>
// kernel: tpu_custom_call.1
$region0: #{tpu_custom_call.1}
  #allocation0 [shape = 'u32[]', space=smem, size = 0x4, offset = 0x4, fixed_abs, tag = 'smem constant byte address 0x4 - core index']
  #allocation1 [shape = 'u32[144,128]{1,0:T(1,128)}', space=vmem, size = 0x12000, scoped, tag = 'internal scratch']
  %s0 = inlined_call_operand.hbm [shape: f32[2,8,32], index: 0, kind: input, shape index: {}]
  %s1 = inlined_call_operand.hbm [shape: f32[32,32], index: 1, kind: input, shape index: {}]
  %s2 = inlined_call_operand.vmem [shape: f32[1,32], index: 2, kind: input, shape index: {}]
  %s3 = inlined_call_operand.hbm [shape: f32[2,8,32], index: 3, kind: output, shape index: {}]
  %s4 = sld [smem:[#allocation0]]
  $region30: #{tpu_custom_call.1} parent=0
    _
  %s6 = ssub.s32 1, %s4
  %s7 = scalar_select 0, %s6, %s4
  $region1: #{tpu_custom_call.1} parent=0
    #allocation2 [shape = 'u8[8192]{0}', space=vmem, size = 0x2000, scoped, tag = 'input window, operand 0, single buffered']
    #allocation3 [shape = 's32[1]{0}', space=sflag, size = 0x4, scoped, tag = 'scoped memory for tpu_custom_call.1']
    #allocation4 [shape = 's32[1]{0}', space=sflag, size = 0x4, scoped, tag = 'scoped memory for tpu_custom_call.1']
    #allocation5 [shape = 'u8[16384]{0}', space=vmem, size = 0x4000, scoped, tag = 'input window, operand 1, single buffered']
    #allocation6 [shape = 's32[1]{0}', space=sflag, size = 0x4, scoped, tag = 'scoped memory for tpu_custom_call.1']
    #allocation7 [shape = 'u8[8192]{0}', space=vmem, size = 0x2000, scoped, tag = 'output window, operand 0, single buffered']
    %8 = vsyncpa [#allocation3], 0
    %9 = vsyncpa [#allocation6], 0
    %10 = vsyncpa [#allocation4], 0
    // Predicated region
    $region2: #{tpu_custom_call.1} parent=1 // pred_check
      _
    $region3: #{tpu_custom_call.1} parent=1 // pred_check_branch
      %12 = sbr.rel (0) target = $region5
    $region4: #{tpu_custom_call.1} parent=1 // pred_region
      %s14 = ssub.s32 256, 256
      %15 = vsyncadd [#allocation3], %s14
      %s16 = sshll.u32 [#allocation2], 4
      %s17 = int_to_ptr.vmem [resolvable:$true] %s16
      %22 = dma.hbm_to_vmem [thread:$0]  %s0, 256, %s17, [#allocation3], 128, 128, 8
    $region5: #{tpu_custom_call.1} parent=1 // pred_fallthru
      _
    // Predicated region
    $region6: #{tpu_custom_call.1} parent=1 // pred_check
      _
    $region7: #{tpu_custom_call.1} parent=1 // pred_check_branch
      %24 = sbr.rel (0) target = $region9
    $region8: #{tpu_custom_call.1} parent=1 // pred_region
      %s26 = ssub.s32 512, 512
      %27 = vsyncadd [#allocation6], %s26
      %s28 = sshll.u32 [#allocation5], 4
      %s29 = int_to_ptr.vmem [resolvable:$true] %s28
      %34 = dma.hbm_to_vmem [thread:$0]  %s1, 512, %s29, [#allocation6], 128, 128, 8
    $region9: #{tpu_custom_call.1} parent=1 // pred_fallthru
      _
    // Predicated region
    $region10: #{tpu_custom_call.1} parent=1 // pred_check
      _
    $region11: #{tpu_custom_call.1} parent=1 // pred_check_branch
      %36 = sbr.rel (0) target = $region13
    $region12: #{tpu_custom_call.1} parent=1 // pred_region
      _
    $region13: #{tpu_custom_call.1} parent=1 // pred_fallthru
      _
    // Predicated region
    $region14: #{tpu_custom_call.1} parent=1 // pred_check
      _
    $region15: #{tpu_custom_call.1} parent=1 // pred_check_branch
      %38 = sbr.rel (0) target = $region17
    $region16: #{tpu_custom_call.1} parent=1 // pred_region
      %39 = dma.done [#allocation3], 256
    $region17: #{tpu_custom_call.1} parent=1 // pred_fallthru
      _
    // Predicated region
    $region18: #{tpu_custom_call.1} parent=1 // pred_check
      _
    $region19: #{tpu_custom_call.1} parent=1 // pred_check_branch
      %41 = sbr.rel (0) target = $region21
    $region20: #{tpu_custom_call.1} parent=1 // pred_region
      %42 = dma.done [#allocation6], 512
    $region21: #{tpu_custom_call.1} parent=1 // pred_fallthru
      _
    %v43 = vld [vmem:[#allocation2] sm:$0xff]
    %v44 = vld [vmem:[#allocation2 + $0x8] sm:$0xff]
    %vm45 = vcmask 261120
    %v46 = vsel %vm45, %v43, -inf
    %v47 = vrot.slane %v46, 4
    %v48 = vmax.f32 %v46, %v47
    %v49 = vrot.slane %v48, 2
    %v50 = vmax.f32 %v48, %v49
    %v51 = vrot.slane %v50, 1
    %v52 = vmax.f32 %v50, %v51
    %v53 = vsel %vm45, %v44, -inf
    %v54 = vrot.slane %v53, 4
    %v55 = vmax.f32 %v53, %v54
    %v56 = vrot.slane %v55, 2
    %v57 = vmax.f32 %v55, %v56
    %v58 = vrot.slane %v57, 1
    %v59 = vmax.f32 %v57, %v58
    %v60 = vsub.f32 %v43, %v52
    %v61 = vsub.f32 %v44, %v59
    %v62 = vld [vmem:[#allocation5] sm:$0xff]
    %v63 = vld [vmem:[#allocation5 + $0x8] sm:$0xff]
    %v64 = vld [vmem:[#allocation5 + $0x10] sm:$0xff]
    %v65 = vld [vmem:[#allocation5 + $0x18] sm:$0xff]
    %v66 = vld [vmem:[%s2] sm:$0x1]
    %v68 = vlaneseq
    %v69 = vshrl.u32 %v68, 7
    %v70 = vsub.s32 0, %v69
    %v71 = vrot.slane %v66, %v70
    %v74 = vsel %vm45, %v60, 0
    %v77 = vsel %vm45, %v61, 0
    %79 = vmatprep.subr.mxu0 0.0
    %80 = vmatpush1.msra.mxu0 0.0
    %81 = vmatprep.subr.mxu0 0.0
    %82 = vmatpush1.msra.mxu0 0.0
    %83 = vmatprep.subr.mxu0 0.0
    %84 = vmatpush1.msra.mxu0 0.0
    %85 = vmatprep.subr.mxu0 0.0
    %86 = vmatpush1.msra.mxu0 0.0
    %87 = vmatprep.subr.mxu0 0.0
    %88 = vmatpush1.msra.mxu0 0.0
    %89 = vmatprep.subr.mxu0 0.0
    %90 = vmatpush1.msra.mxu0 0.0
    %91 = vmatprep.subr.mxu0 0.0
    %92 = vmatpush1.msra.mxu0 0.0
    %93 = vmatprep.subr.mxu0 0.0
    %94 = vmatpush1.msra.mxu0 0.0
    %95 = vmatprep.subr.mxu0 0.0
    %96 = vmatpush1.msra.mxu0 0.0
    %97 = vmatprep.subr.mxu0 0.0
    %98 = vmatpush1.msra.mxu0 0.0
    %99 = vmatprep.subr.mxu0 0.0
    %100 = vmatpush1.msra.mxu0 0.0
    %101 = vmatprep.subr.mxu0 0.0
    %102 = vmatpush1.msra.mxu0 0.0
    %103 = vmatprep.subr.mxu0 0.0
    %104 = vmatpush1.msra.mxu0 %v65
    %105 = vmatprep.subr.mxu0 0.0
    %106 = vmatpush1.msra.mxu0 %v64
    %107 = vmatprep.subr.mxu0 0.0
    %108 = vmatpush1.msra.mxu0 %v63
    %109 = vmatprep.subr.mxu0 0.0
    %110 = vmatpush1.msra.mxu0 %v62
    %111 = vmatprep.subr.mxu0 0.0
    %112 = vmatpush2.msra.mxu0 0.0
    %113 = vmatprep.subr.mxu0 0.0
    %114 = vmatpush2.msra.mxu0 0.0
    %115 = vmatprep.subr.mxu0 0.0
    %116 = vmatpush2.msra.mxu0 0.0
    %117 = vmatprep.subr.mxu0 0.0
    %118 = vmatpush2.msra.mxu0 0.0
    %119 = vmatprep.subr.mxu0 0.0
    %120 = vmatpush2.msra.mxu0 0.0
    %121 = vmatprep.subr.mxu0 0.0
    %122 = vmatpush2.msra.mxu0 0.0
    %123 = vmatprep.subr.mxu0 0.0
    %124 = vmatpush2.msra.mxu0 0.0
    %125 = vmatprep.subr.mxu0 0.0
    %126 = vmatpush2.msra.mxu0 0.0
    %127 = vmatprep.subr.mxu0 0.0
    %128 = vmatpush2.msra.mxu0 0.0
    %129 = vmatprep.subr.mxu0 0.0
    %130 = vmatpush2.msra.mxu0 0.0
    %131 = vmatprep.subr.mxu0 0.0
    %132 = vmatpush2.msra.mxu0 0.0
    %133 = vmatprep.subr.mxu0 0.0
    %134 = vmatpush2.msra.mxu0 0.0
    %135 = vmatprep.subr.mxu0 0.0
    %136 = vmatpush2.msra.mxu0 0.0
    %137 = vmatprep.subr.mxu0 0.0
    %138 = vmatpush2.msra.mxu0 0.0
    %139 = vmatprep.subr.mxu0 0.0
    %140 = vmatpush2.msra.mxu0 0.0
    %141 = vmatprep.subr.mxu0 0.0
    %142 = vmatpush2.msra.mxu0 0.0
    %143 = vmatprep.mubr.f32.mxu0 0.0
    %144 = vmatmul.mubr.f32.gmra.mxu0 %v74
    %v145 = vpop.f32.mrf.mxu0
    %v146 = vadd.f32 %v71, %v145
    %v147 = vpop.f32.mrf.mxu0
    %148 = vmatprep.mubr.f32.mxu0 0.0
    %149 = vmatmul.mubr.f32.gmra.mxu0 %v77
    %v150 = vpop.f32.mrf.mxu0
    %v151 = vadd.f32 %v71, %v150
    %v152 = vpop.f32.mrf.mxu0
    %153 = vdwg.mxu0
    %154 = vst.msk [vmem:[#allocation7] sm:$0xff] %vm45, %v146
    %155 = vst.msk [vmem:[#allocation7 + $0x8] sm:$0xff] %vm45, %v151
    // Predicated region
    $region22: #{tpu_custom_call.1} parent=1 // pred_check
      _
    $region23: #{tpu_custom_call.1} parent=1 // pred_check_branch
      %157 = sbr.rel (0) target = $region25
    $region24: #{tpu_custom_call.1} parent=1 // pred_region
      %s159 = ssub.s32 256, 256
      %160 = vsyncadd [#allocation4], %s159
      %s161 = sshll.u32 [#allocation7], 4
      %s162 = int_to_ptr.vmem [resolvable:$true] %s161
      %167 = dma.vmem_to_hbm [thread:$0]  %s162, 256, %s3, [#allocation4], 128, 128, 8
    $region25: #{tpu_custom_call.1} parent=1 // pred_fallthru
      _
    // Predicated region
    $region26: #{tpu_custom_call.1} parent=1 // pred_check
      _
    $region27: #{tpu_custom_call.1} parent=1 // pred_check_branch
      %169 = sbr.rel (0) target = $region29
    $region28: #{tpu_custom_call.1} parent=1 // pred_region
      %170 = dma.done [#allocation4], 256
    $region29: #{tpu_custom_call.1} parent=1 // pred_fallthru
      _
    %171 = vsyncpa [#allocation3], 1
    %172 = vsyncpa [#allocation6], 1
    %173 = vsyncpa [#allocation4], 1

// kernel: tpu_custom_call.1
$region0: #{tpu_custom_call.1}
  #allocation0 [shape = 'u32[]', space=smem, size = 0x4, offset = 0x4, fixed_abs, tag = 'smem constant byte address 0x4 - core index']
  #allocation1 [shape = 'u32[144,128]{1,0:T(1,128)}', space=vmem, size = 0x12000, scoped, tag = 'internal scratch']
  %s0 = inlined_call_operand.hbm [shape: f32[2,8,32], index: 0, kind: input, shape index: {}]
  %s1 = inlined_call_operand.hbm [shape: f32[32,32], index: 1, kind: input, shape index: {}]
  %s2 = inlined_call_operand.vmem [shape: f32[1,32], index: 2, kind: input, shape index: {}]
  %s3 = inlined_call_operand.hbm [shape: f32[2,8,32], index: 3, kind: output, shape index: {}]
  %s4 = sld [smem:[#allocation0]]
  $region30: #{tpu_custom_call.1} parent=0
    _
  %s6 = ssub.s32 1, %s4
  %s7 = scalar_select 0, %s6, %s4
  $region1: #{tpu_custom_call.1} parent=0
    #allocation2 [shape = 'u8[8192]{0}', space=vmem, size = 0x2000, scoped, tag = 'input window, operand 0, single buffered']
    #allocation3 [shape = 's32[1]{0}', space=sflag, size = 0x4, scoped, tag = 'scoped memory for tpu_custom_call.1']
    #allocation4 [shape = 's32[1]{0}', space=sflag, size = 0x4, scoped, tag = 'scoped memory for tpu_custom_call.1']
    #allocation5 [shape = 'u8[16384]{0}', space=vmem, size = 0x4000, scoped, tag = 'input window, operand 1, single buffered']
    #allocation6 [shape = 's32[1]{0}', space=sflag, size = 0x4, scoped, tag = 'scoped memory for tpu_custom_call.1']
    #allocation7 [shape = 'u8[8192]{0}', space=vmem, size = 0x2000, scoped, tag = 'output window, operand 0, single buffered']
    %8 = vsyncpa [#allocation3], 0
    %9 = vsyncpa [#allocation6], 0
    %10 = vsyncpa [#allocation4], 0
    // Predicated region
    $region2: #{tpu_custom_call.1} parent=1 // pred_check
      _
    $region3: #{tpu_custom_call.1} parent=1 // pred_check_branch
      %12 = sbr.rel (0) target = $region5
    $region4: #{tpu_custom_call.1} parent=1 // pred_region
      %s14 = ssub.s32 256, 256
      %15 = vsyncadd [#allocation3], %s14
      %s16 = sshll.u32 [#allocation2], 4
      %s17 = int_to_ptr.vmem [resolvable:$true] %s16
      %22 = dma.hbm_to_vmem [thread:$0]  %s0, 256, %s17, [#allocation3], 128, 128, 8
    $region5: #{tpu_custom_call.1} parent=1 // pred_fallthru
      _
    // Predicated region
    $region6: #{tpu_custom_call.1} parent=1 // pred_check
      _
    $region7: #{tpu_custom_call.1} parent=1 // pred_check_branch
      %24 = sbr.rel (0) target = $region9
    $region8: #{tpu_custom_call.1} parent=1 // pred_region
      %s26 = ssub.s32 512, 512
      %27 = vsyncadd [#allocation6], %s26
      %s28 = sshll.u32 [#allocation5], 4
      %s29 = int_to_ptr.vmem [resolvable:$true] %s28
      %34 = dma.hbm_to_vmem [thread:$0]  %s1, 512, %s29, [#allocation6], 128, 128, 8
    $region9: #{tpu_custom_call.1} parent=1 // pred_fallthru
      _
    // Predicated region
    $region10: #{tpu_custom_call.1} parent=1 // pred_check
      _
    $region11: #{tpu_custom_call.1} parent=1 // pred_check_branch
      %36 = sbr.rel (0) target = $region13
    $region12: #{tpu_custom_call.1} parent=1 // pred_region
      _
    $region13: #{tpu_custom_call.1} parent=1 // pred_fallthru
      _
    // Predicated region
    $region14: #{tpu_custom_call.1} parent=1 // pred_check
      _
    $region15: #{tpu_custom_call.1} parent=1 // pred_check_branch
      %38 = sbr.rel (0) target = $region17
    $region16: #{tpu_custom_call.1} parent=1 // pred_region
      %39 = dma.done [#allocation3], 256
    $region17: #{tpu_custom_call.1} parent=1 // pred_fallthru
      _
    // Predicated region
    $region18: #{tpu_custom_call.1} parent=1 // pred_check
      _
    $region19: #{tpu_custom_call.1} parent=1 // pred_check_branch
      %41 = sbr.rel (0) target = $region21
    $region20: #{tpu_custom_call.1} parent=1 // pred_region
      %42 = dma.done [#allocation6], 512
    $region21: #{tpu_custom_call.1} parent=1 // pred_fallthru
      _
    %v43 = vld [vmem:[#allocation2] sm:$0xff]
    %v44 = vld [vmem:[#allocation2 + $0x8] sm:$0xff]
    %vm45 = vcmask 261120
    %v46 = vsel %vm45, %v43, -inf
    %v47 = vrot.slane %v46, 4
    %v48 = vmax.f32 %v46, %v47
    %v49 = vrot.slane %v48, 2
    %v50 = vmax.f32 %v48, %v49
    %v51 = vrot.slane %v50, 1
    %v52 = vmax.f32 %v50, %v51
    %v53 = vsel %vm45, %v44, -inf
    %v54 = vrot.slane %v53, 4
    %v55 = vmax.f32 %v53, %v54
    %v56 = vrot.slane %v55, 2
    %v57 = vmax.f32 %v55, %v56
    %v58 = vrot.slane %v57, 1
    %v59 = vmax.f32 %v57, %v58
    %v60 = vsub.f32 %v43, %v52
    %v61 = vsub.f32 %v44, %v59
    %v62 = vld [vmem:[#allocation5] sm:$0xff]
    %v63 = vld [vmem:[#allocation5 + $0x8] sm:$0xff]
    %v64 = vld [vmem:[#allocation5 + $0x10] sm:$0xff]
    %v65 = vld [vmem:[#allocation5 + $0x18] sm:$0xff]
    %v66 = vld [vmem:[%s2] sm:$0x1]
    %v68 = vlaneseq
    %v69 = vshrl.u32 %v68, 7
    %v70 = vsub.s32 0, %v69
    %v71 = vrot.slane %v66, %v70
    %v74 = vsel %vm45, %v60, 0
    %v77 = vsel %vm45, %v61, 0
    %79 = vmatprep.subr.mxu0 0.0
    %80 = vmatpush1.msra.mxu0 0.0
    %81 = vmatprep.subr.mxu0 0.0
    %82 = vmatpush1.msra.mxu0 0.0
    %83 = vmatprep.subr.mxu0 0.0
    %84 = vmatpush1.msra.mxu0 0.0
    %85 = vmatprep.subr.mxu0 0.0
    %86 = vmatpush1.msra.mxu0 0.0
    %87 = vmatprep.subr.mxu0 0.0
    %88 = vmatpush1.msra.mxu0 0.0
    %89 = vmatprep.subr.mxu0 0.0
    %90 = vmatpush1.msra.mxu0 0.0
    %91 = vmatprep.subr.mxu0 0.0
    %92 = vmatpush1.msra.mxu0 0.0
    %93 = vmatprep.subr.mxu0 0.0
    %94 = vmatpush1.msra.mxu0 0.0
    %95 = vmatprep.subr.mxu0 0.0
    %96 = vmatpush1.msra.mxu0 0.0
    %97 = vmatprep.subr.mxu0 0.0
    %98 = vmatpush1.msra.mxu0 0.0
    %99 = vmatprep.subr.mxu0 0.0
    %100 = vmatpush1.msra.mxu0 0.0
    %101 = vmatprep.subr.mxu0 0.0
    %102 = vmatpush1.msra.mxu0 0.0
    %103 = vmatprep.subr.mxu0 0.0
    %104 = vmatpush1.msra.mxu0 %v65
    %105 = vmatprep.subr.mxu0 0.0
    %106 = vmatpush1.msra.mxu0 %v64
    %107 = vmatprep.subr.mxu0 0.0
    %108 = vmatpush1.msra.mxu0 %v63
    %109 = vmatprep.subr.mxu0 0.0
    %110 = vmatpush1.msra.mxu0 %v62
    %111 = vmatprep.subr.mxu0 0.0
    %112 = vmatpush2.msra.mxu0 0.0
    %113 = vmatprep.subr.mxu0 0.0
    %114 = vmatpush2.msra.mxu0 0.0
    %115 = vmatprep.subr.mxu0 0.0
    %116 = vmatpush2.msra.mxu0 0.0
    %117 = vmatprep.subr.mxu0 0.0
    %118 = vmatpush2.msra.mxu0 0.0
    %119 = vmatprep.subr.mxu0 0.0
    %120 = vmatpush2.msra.mxu0 0.0
    %121 = vmatprep.subr.mxu0 0.0
    %122 = vmatpush2.msra.mxu0 0.0
    %123 = vmatprep.subr.mxu0 0.0
    %124 = vmatpush2.msra.mxu0 0.0
    %125 = vmatprep.subr.mxu0 0.0
    %126 = vmatpush2.msra.mxu0 0.0
    %127 = vmatprep.subr.mxu0 0.0
    %128 = vmatpush2.msra.mxu0 0.0
    %129 = vmatprep.subr.mxu0 0.0
    %130 = vmatpush2.msra.mxu0 0.0
    %131 = vmatprep.subr.mxu0 0.0
    %132 = vmatpush2.msra.mxu0 0.0
    %133 = vmatprep.subr.mxu0 0.0
    %134 = vmatpush2.msra.mxu0 0.0
    %135 = vmatprep.subr.mxu0 0.0
    %136 = vmatpush2.msra.mxu0 0.0
    %137 = vmatprep.subr.mxu0 0.0
    %138 = vmatpush2.msra.mxu0 0.0
    %139 = vmatprep.subr.mxu0 0.0
    %140 = vmatpush2.msra.mxu0 0.0
    %141 = vmatprep.subr.mxu0 0.0
    %142 = vmatpush2.msra.mxu0 0.0
    %143 = vmatprep.mubr.f32.mxu0 0.0
    %144 = vmatmul.mubr.f32.gmra.mxu0 %v74
    %v145 = vpop.f32.mrf.mxu0
    %v146 = vadd.f32 %v71, %v145
    %v147 = vpop.f32.mrf.mxu0
    %148 = vmatprep.mubr.f32.mxu0 0.0
    %149 = vmatmul.mubr.f32.gmra.mxu0 %v77
    %v150 = vpop.f32.mrf.mxu0
    %v151 = vadd.f32 %v71, %v150
    %v152 = vpop.f32.mrf.mxu0
    %153 = vdwg.mxu0
    %154 = vst.msk [vmem:[#allocation7] sm:$0xff] %vm45, %v146
    %155 = vst.msk [vmem:[#allocation7 + $0x8] sm:$0xff] %vm45, %v151
    // Predicated region
    $region22: #{tpu_custom_call.1} parent=1 // pred_check
      _
    $region23: #{tpu_custom_call.1} parent=1 // pred_check_branch
      %157 = sbr.rel (0) target = $region25
    $region24: #{tpu_custom_call.1} parent=1 // pred_region
      %s159 = ssub.s32 256, 256
      %160 = vsyncadd [#allocation4], %s159
      %s161 = sshll.u32 [#allocation7], 4
      %s162 = int_to_ptr.vmem [resolvable:$true] %s161
      %167 = dma.vmem_to_hbm [thread:$0]  %s162, 256, %s3, [#allocation4], 128, 128, 8
    $region25: #{tpu_custom_call.1} parent=1 // pred_fallthru
      _
    // Predicated region
    $region26: #{tpu_custom_call.1} parent=1 // pred_check
      _
    $region27: #{tpu_custom_call.1} parent=1 // pred_check_branch
      %169 = sbr.rel (0) target = $region29
    $region28: #{tpu_custom_call.1} parent=1 // pred_region
      %170 = dma.done [#allocation4], 256
    $region29: #{tpu_custom_call.1} parent=1 // pred_fallthru
      _
    %171 = vsyncpa [#allocation3], 1
    %172 = vsyncpa [#allocation6], 1
    %173 = vsyncpa [#allocation4], 1

</llo_original>
